<compile_context>
chip_gen: v7x
topology: tpu7x:2x2x1
jax: 0.10.0
libtpu: 0.0.40
codegen_flags: <defaults>
</compile_context>

<pallas_src>
import math

import jax
import jax.numpy as jnp
from jax.experimental import pallas as pl
from jax.experimental.pallas import tpu as pltpu

# ----------------------------- model config ---------------------------------
B = 8                       # batch
STATE_DIM = 8
ONE_HOT_DEPTH = 4
H1_DIM = 32
RESNET_DIM = 64
NUM_RESNET_BLOCKS = 3       # spec runs ALL of these
BATCH_NORM = True
IN_DIM = STATE_DIM * ONE_HOT_DEPTH          # 32
EPS = 1e-5
R = RESNET_DIM

# --------------------------- packed-slab row layout --------------------------
# One (SLAB_ROWS, 64) f32 slab; every region starts at a multiple of 8 rows and
# is 64 lanes wide, so in-kernel static slices never cross (8, 128) tiles.
_FC1 = 0                                     # (IN_DIM, 64)  fc1_w, lane-padded
_FC2 = _FC1 + IN_DIM                         # (R, 64)       fc2_w, rows 32.. zero
_BLK = _FC2 + R                              # 2*NBLK x (R, 64) residual weights
_OUT = _BLK + 2 * NUM_RESNET_BLOCKS * R      # (R, 64)       composed head∘tail
_BIAS = _OUT + R                             # (8, 64)       composed bias (row 0)
SLAB_ROWS = _BIAS + 8                        # 552


# ------------------------------ Pallas kernel --------------------------------
def resnet_kernel(x_ref, w_ref, o_ref):
    """Whole (tiny) network resident in VMEM; single grid point, one weight slab."""

    def bn(h):
        # Training-mode BatchNorm1d at init: batch mean, biased variance,
        # eps=1e-5, gamma=1, beta=0.  var = E[h^2] - mu^2 so the two sublane
        # reductions are independent and can overlap on the XLU.
        inv_n = 1.0 / h.shape[0]
        s1 = jnp.sum(h, axis=0, keepdims=True)
        s2 = jnp.sum(h * h, axis=0, keepdims=True)
        mu = s1 * inv_n
        var = jnp.maximum(s2 * inv_n - mu * mu, 0.0)   # guard f32 cancellation
        return (h - mu) * jax.lax.rsqrt(var + EPS)

    x = x_ref[...]                                                       # (B, 32)

    # fc1 -> bn1 -> relu  (Linear bias dropped: exact under batch-stat BN;
    # fc1_w is lane-padded to 64, padded cols stay exactly 0 through bn/relu)
    h = jnp.dot(x, w_ref[_FC1:_FC1 + IN_DIM, :],
                preferred_element_type=jnp.float32)                      # (B, 64)
    h = jnp.maximum(bn(h), 0.0)

    # fc2 -> bn2 -> relu  (bias dropped; fc2_w rows 32..63 are zero)
    h = jnp.dot(h, w_ref[_FC2:_FC2 + R, :],
                preferred_element_type=jnp.float32)                      # (B, 64)
    h = jnp.maximum(bn(h), 0.0)

    # residual blocks: fc -> bn -> relu -> fc -> bn, then relu(x + res)
    for k in range(NUM_RESNET_BLOCKS):
        res = h
        r0 = _BLK + (2 * k) * R
        r1 = _BLK + (2 * k + 1) * R
        t = jnp.dot(h, w_ref[r0:r0 + R, :], preferred_element_type=jnp.float32)
        t = jnp.maximum(bn(t), 0.0)
        t = jnp.dot(t, w_ref[r1:r1 + R, :], preferred_element_type=jnp.float32)
        h = jnp.maximum(bn(t) + res, 0.0)

    # heads: fc_out_i ∘ out_l_i composed offline -> single matmul + bias row.
    y = jnp.dot(h, w_ref[_OUT:_OUT + R, :],
                preferred_element_type=jnp.float32)                      # (B, 64)
    y = y + w_ref[_BIAS:_BIAS + 1, :]                                    # (1,64) bcast
    o_ref[...] = y[:, :3]                                                # (B, 3)


# -------------------------------- wrapper ------------------------------------
@jax.jit
def resnet_forward(states, slab):
    # One-hot + flatten kept as pre-kernel JAX glue (one tiny fusion); an
    # in-kernel lane repeat/gather of the int states has no cheap lowering.
    x = jax.nn.one_hot(states, ONE_HOT_DEPTH, dtype=jnp.float32)
    x = x.reshape(states.shape[0], IN_DIM)

    vmem = pl.BlockSpec(memory_space=pltpu.MemorySpace.VMEM)
    # Gridless call: ~140 KB total, fits VMEM on v5e/v6e/v7x.
    # NOTE: do NOT grid over the batch dim - training-mode BatchNorm stats are
    # per-batch; per-tile stats would silently change results.
    # TODO(synk): for throughput over many independent batches, add a leading
    # "parallel" grid axis where each step is one FULL batch (BN stays exact).
    return pl.pallas_call(
        resnet_kernel,
        out_shape=jax.ShapeDtypeStruct((states.shape[0], 3), jnp.float32),
        in_specs=[vmem, vmem],
        out_specs=vmem,
    )(x, slab)


# ------------------------ param init (PyTorch-faithful) ----------------------
def init_params(key):
    ks = iter(jax.random.split(key, 16))

    def lin(k, fan_in, fan_out):
        bound = 1.0 / math.sqrt(fan_in)
        kw, kb = jax.random.split(k)
        w = jax.random.uniform(kw, (fan_in, fan_out), jnp.float32, -bound, bound)
        b = jax.random.uniform(kb, (1, fan_out), jnp.float32, -bound, bound)
        return w, b

    p = {}
    p["fc1_w"], p["fc1_b"] = lin(next(ks), IN_DIM, H1_DIM)
    p["fc2_w"], p["fc2_b"] = lin(next(ks), H1_DIM, RESNET_DIM)

    blk_w, blk_b = [], []
    for _ in range(NUM_RESNET_BLOCKS):
        ws, bs = [], []
        for _ in range(2):
            w, b = lin(next(ks), RESNET_DIM, RESNET_DIM)
            ws.append(w)
            bs.append(b)
        blk_w.append(jnp.stack(ws))
        blk_b.append(jnp.stack(bs))
    p["blk_w"] = jnp.stack(blk_w)                               # (NBLK, 2, R, R)
    p["blk_b"] = jnp.stack(blk_b)                               # (NBLK, 2, 1, R)

    fco_w, fco_b = [], []
    for _ in range(3):
        w, b = lin(next(ks), RESNET_DIM, RESNET_DIM)
        fco_w.append(w)
        fco_b.append(b)
    p["fco_w"] = jnp.stack(fco_w)                               # (3, R, R)
    p["fco_b"] = jnp.stack(fco_b)                               # (3, 1, R)

    outl_w, outl_b = [], []
    for _ in range(3):
        w, b = lin(next(ks), RESNET_DIM, 1)
        outl_w.append(w)
        outl_b.append(b[0, 0])
    p["outl_w"] = jnp.stack(outl_w)                             # (3, R, 1)
    p["outl_b"] = jnp.stack(outl_b)                             # (3,)
    return p


def pack_params(p):
    """Pack all weights into one (SLAB_ROWS, 64) f32 slab (layout above)."""
    def pad_lanes(a):
        return jnp.pad(a, ((0, 0), (0, R - a.shape[1])))

    fc1 = pad_lanes(p["fc1_w"])                                  # (32, 64)
    fc2 = jnp.pad(p["fc2_w"], ((0, R - H1_DIM), (0, 0)))         # (64, 64)
    blk = p["blk_w"].reshape(2 * NUM_RESNET_BLOCKS * R, R)       # (384, 64)

    # compose fc_out_i ∘ out_l_i (no nonlinearity in between -> exact)
    w_cols, b_cols = [], []
    for i in range(3):
        w_cols.append(p["fco_w"][i] @ p["outl_w"][i])                       # (64, 1)
        b_cols.append(p["fco_b"][i] @ p["outl_w"][i] + p["outl_b"][i])      # (1, 1)
    w_out = pad_lanes(jnp.concatenate(w_cols, axis=1))           # (64, 64)
    b_out = jnp.pad(pad_lanes(jnp.concatenate(b_cols, axis=1)),
                    ((0, 7), (0, 0)))                            # (8, 64)

    slab = jnp.concatenate([fc1, fc2, blk, w_out, b_out], axis=0)
    assert slab.shape == (SLAB_ROWS, R), slab.shape
    return slab


# ----------------------- pure-JAX reference (spec-faithful) ------------------
def reference_forward(states, p):
    x = jax.nn.one_hot(states, ONE_HOT_DEPTH, dtype=jnp.float32).reshape(-1, IN_DIM)

    def bn(h):  # training-mode BatchNorm1d at init (gamma=1, beta=0, biased var)
        mu = h.mean(0, keepdims=True)
        var = ((h - mu) ** 2).mean(0, keepdims=True)
        return (h - mu) * jax.lax.rsqrt(var + EPS)

    h = jax.nn.relu(bn(x @ p["fc1_w"] + p["fc1_b"]))
    h = jax.nn.relu(bn(h @ p["fc2_w"] + p["fc2_b"]))
    for k in range(NUM_RESNET_BLOCKS):
        res = h
        t = jax.nn.relu(bn(h @ p["blk_w"][k, 0] + p["blk_b"][k, 0]))
        t = bn(t @ p["blk_w"][k, 1] + p["blk_b"][k, 1])
        h = jax.nn.relu(t + res)
    cols = []
    for i in range(3):
        l = h @ p["fco_w"][i] + p["fco_b"][i]          # fc_out{i}: (B, R)
        cols.append(l @ p["outl_w"][i] + p["outl_b"][i])   # out_l{i}: (B, 1)
    # torch.stack((l1,l2,l3)).squeeze().T -> (B, 3)
    return jnp.concatenate(cols, axis=-1)


# ------------------------------------ main ------------------------------------
if __name__ == "__main__":
    key = jax.random.PRNGKey(0)
    k_states, k_params = jax.random.split(key)

    states = jax.random.randint(k_states, (B, STATE_DIM), 0, ONE_HOT_DEPTH, jnp.int32)
    params = init_params(k_params)
    slab = pack_params(params)

    out = jax.block_until_ready(resnet_forward(states, slab))
    ref = reference_forward(states, params)

    assert out.shape == (B, 3), out.shape
    assert jnp.allclose(out, ref, atol=1e-4, rtol=1e-4), (out, ref)

    print("KERNEL_OK")
</pallas_src>

<mosaic_0001>
module attributes {stable_mosaic.version = 11 : i64} {
  func.func @resnet_kernel(%arg0: memref<8x32xf32, #tpu.memory_space<vmem>>, %arg1: memref<552x64xf32, #tpu.memory_space<vmem>>, %arg2: memref<8x3xf32, #tpu.memory_space<vmem>>) attributes {dimension_semantics = [], scalar_prefetch = 0 : i64, scratch_operands = 0 : i64, tpu.core_type = #tpu.core_type<tc>} {
    %c0 = arith.constant 0 : index
    %c0_0 = arith.constant 0 : index
    %0 = vector.load %arg0[%c0, %c0_0] : memref<8x32xf32, #tpu.memory_space<vmem>>, vector<8x32xf32>
    %c0_1 = arith.constant 0 : index
    %c0_2 = arith.constant 0 : index
    %1 = vector.load %arg1[%c0_1, %c0_2] : memref<552x64xf32, #tpu.memory_space<vmem>>, vector<32x64xf32>
    %cst = arith.constant dense<0.000000e+00> : vector<8x64xf32>
    %2 = tpu.matmul %0, %1, %cst {dimension_numbers = #tpu.dot_dimension_numbers<[1], [0], [0], [1], [0, 0, 1, 1], [], []>} : vector<8x32xf32>, vector<32x64xf32>, vector<8x64xf32> -> vector<8x64xf32>
    %cst_3 = arith.constant dense<0.000000e+00> : vector<64xf32>
    %3 = vector.multi_reduction <add>, %2, %cst_3 [0] : vector<8x64xf32> to vector<64xf32>
    %4 = vector.shape_cast %3 : vector<64xf32> to vector<1x64xf32>
    %5 = arith.mulf %2, %2 : vector<8x64xf32>
    %cst_4 = arith.constant dense<0.000000e+00> : vector<64xf32>
    %6 = vector.multi_reduction <add>, %5, %cst_4 [0] : vector<8x64xf32> to vector<64xf32>
    %7 = vector.shape_cast %6 : vector<64xf32> to vector<1x64xf32>
    %cst_5 = arith.constant 1.250000e-01 : f32
    %8 = vector.broadcast %cst_5 : f32 to vector<1x64xf32>
    %9 = arith.mulf %4, %8 : vector<1x64xf32>
    %cst_6 = arith.constant 1.250000e-01 : f32
    %10 = vector.broadcast %cst_6 : f32 to vector<1x64xf32>
    %11 = arith.mulf %7, %10 : vector<1x64xf32>
    %12 = arith.mulf %9, %9 : vector<1x64xf32>
    %13 = arith.subf %11, %12 : vector<1x64xf32>
    %cst_7 = arith.constant 0.000000e+00 : f32
    %14 = vector.broadcast %cst_7 : f32 to vector<1x64xf32>
    %15 = arith.maximumf %13, %14 : vector<1x64xf32>
    %16 = vector.broadcast %9 : vector<1x64xf32> to vector<8x64xf32>
    %17 = arith.subf %2, %16 : vector<8x64xf32>
    %cst_8 = arith.constant 9.99999974E-6 : f32
    %18 = vector.broadcast %cst_8 : f32 to vector<1x64xf32>
    %19 = arith.addf %15, %18 : vector<1x64xf32>
    %20 = math.rsqrt %19 : vector<1x64xf32>
    %21 = vector.broadcast %20 : vector<1x64xf32> to vector<8x64xf32>
    %22 = arith.mulf %17, %21 : vector<8x64xf32>
    %cst_9 = arith.constant 0.000000e+00 : f32
    %23 = vector.broadcast %cst_9 : f32 to vector<8x64xf32>
    %24 = arith.maximumf %22, %23 : vector<8x64xf32>
    %c32 = arith.constant 32 : index
    %c0_10 = arith.constant 0 : index
    %25 = vector.load %arg1[%c32, %c0_10] : memref<552x64xf32, #tpu.memory_space<vmem>>, vector<64x64xf32>
    %cst_11 = arith.constant dense<0.000000e+00> : vector<8x64xf32>
    %26 = tpu.matmul %24, %25, %cst_11 {dimension_numbers = #tpu.dot_dimension_numbers<[1], [0], [0], [1], [0, 0, 1, 1], [], []>} : vector<8x64xf32>, vector<64x64xf32>, vector<8x64xf32> -> vector<8x64xf32>
    %cst_12 = arith.constant dense<0.000000e+00> : vector<64xf32>
    %27 = vector.multi_reduction <add>, %26, %cst_12 [0] : vector<8x64xf32> to vector<64xf32>
    %28 = vector.shape_cast %27 : vector<64xf32> to vector<1x64xf32>
    %29 = arith.mulf %26, %26 : vector<8x64xf32>
    %cst_13 = arith.constant dense<0.000000e+00> : vector<64xf32>
    %30 = vector.multi_reduction <add>, %29, %cst_13 [0] : vector<8x64xf32> to vector<64xf32>
    %31 = vector.shape_cast %30 : vector<64xf32> to vector<1x64xf32>
    %cst_14 = arith.constant 1.250000e-01 : f32
    %32 = vector.broadcast %cst_14 : f32 to vector<1x64xf32>
    %33 = arith.mulf %28, %32 : vector<1x64xf32>
    %cst_15 = arith.constant 1.250000e-01 : f32
    %34 = vector.broadcast %cst_15 : f32 to vector<1x64xf32>
    %35 = arith.mulf %31, %34 : vector<1x64xf32>
    %36 = arith.mulf %33, %33 : vector<1x64xf32>
    %37 = arith.subf %35, %36 : vector<1x64xf32>
    %cst_16 = arith.constant 0.000000e+00 : f32
    %38 = vector.broadcast %cst_16 : f32 to vector<1x64xf32>
    %39 = arith.maximumf %37, %38 : vector<1x64xf32>
    %40 = vector.broadcast %33 : vector<1x64xf32> to vector<8x64xf32>
    %41 = arith.subf %26, %40 : vector<8x64xf32>
    %cst_17 = arith.constant 9.99999974E-6 : f32
    %42 = vector.broadcast %cst_17 : f32 to vector<1x64xf32>
    %43 = arith.addf %39, %42 : vector<1x64xf32>
    %44 = math.rsqrt %43 : vector<1x64xf32>
    %45 = vector.broadcast %44 : vector<1x64xf32> to vector<8x64xf32>
    %46 = arith.mulf %41, %45 : vector<8x64xf32>
    %cst_18 = arith.constant 0.000000e+00 : f32
    %47 = vector.broadcast %cst_18 : f32 to vector<8x64xf32>
    %48 = arith.maximumf %46, %47 : vector<8x64xf32>
    %c96 = arith.constant 96 : index
    %c0_19 = arith.constant 0 : index
    %49 = vector.load %arg1[%c96, %c0_19] : memref<552x64xf32, #tpu.memory_space<vmem>>, vector<64x64xf32>
    %cst_20 = arith.constant dense<0.000000e+00> : vector<8x64xf32>
    %50 = tpu.matmul %48, %49, %cst_20 {dimension_numbers = #tpu.dot_dimension_numbers<[1], [0], [0], [1], [0, 0, 1, 1], [], []>} : vector<8x64xf32>, vector<64x64xf32>, vector<8x64xf32> -> vector<8x64xf32>
    %cst_21 = arith.constant dense<0.000000e+00> : vector<64xf32>
    %51 = vector.multi_reduction <add>, %50, %cst_21 [0] : vector<8x64xf32> to vector<64xf32>
    %52 = vector.shape_cast %51 : vector<64xf32> to vector<1x64xf32>
    %53 = arith.mulf %50, %50 : vector<8x64xf32>
    %cst_22 = arith.constant dense<0.000000e+00> : vector<64xf32>
    %54 = vector.multi_reduction <add>, %53, %cst_22 [0] : vector<8x64xf32> to vector<64xf32>
    %55 = vector.shape_cast %54 : vector<64xf32> to vector<1x64xf32>
    %cst_23 = arith.constant 1.250000e-01 : f32
    %56 = vector.broadcast %cst_23 : f32 to vector<1x64xf32>
    %57 = arith.mulf %52, %56 : vector<1x64xf32>
    %cst_24 = arith.constant 1.250000e-01 : f32
    %58 = vector.broadcast %cst_24 : f32 to vector<1x64xf32>
    %59 = arith.mulf %55, %58 : vector<1x64xf32>
    %60 = arith.mulf %57, %57 : vector<1x64xf32>
    %61 = arith.subf %59, %60 : vector<1x64xf32>
    %cst_25 = arith.constant 0.000000e+00 : f32
    %62 = vector.broadcast %cst_25 : f32 to vector<1x64xf32>
    %63 = arith.maximumf %61, %62 : vector<1x64xf32>
    %64 = vector.broadcast %57 : vector<1x64xf32> to vector<8x64xf32>
    %65 = arith.subf %50, %64 : vector<8x64xf32>
    %cst_26 = arith.constant 9.99999974E-6 : f32
    %66 = vector.broadcast %cst_26 : f32 to vector<1x64xf32>
    %67 = arith.addf %63, %66 : vector<1x64xf32>
    %68 = math.rsqrt %67 : vector<1x64xf32>
    %69 = vector.broadcast %68 : vector<1x64xf32> to vector<8x64xf32>
    %70 = arith.mulf %65, %69 : vector<8x64xf32>
    %cst_27 = arith.constant 0.000000e+00 : f32
    %71 = vector.broadcast %cst_27 : f32 to vector<8x64xf32>
    %72 = arith.maximumf %70, %71 : vector<8x64xf32>
    %c160 = arith.constant 160 : index
    %c0_28 = arith.constant 0 : index
    %73 = vector.load %arg1[%c160, %c0_28] : memref<552x64xf32, #tpu.memory_space<vmem>>, vector<64x64xf32>
    %cst_29 = arith.constant dense<0.000000e+00> : vector<8x64xf32>
    %74 = tpu.matmul %72, %73, %cst_29 {dimension_numbers = #tpu.dot_dimension_numbers<[1], [0], [0], [1], [0, 0, 1, 1], [], []>} : vector<8x64xf32>, vector<64x64xf32>, vector<8x64xf32> -> vector<8x64xf32>
    %cst_30 = arith.constant dense<0.000000e+00> : vector<64xf32>
    %75 = vector.multi_reduction <add>, %74, %cst_30 [0] : vector<8x64xf32> to vector<64xf32>
    %76 = vector.shape_cast %75 : vector<64xf32> to vector<1x64xf32>
    %77 = arith.mulf %74, %74 : vector<8x64xf32>
    %cst_31 = arith.constant dense<0.000000e+00> : vector<64xf32>
    %78 = vector.multi_reduction <add>, %77, %cst_31 [0] : vector<8x64xf32> to vector<64xf32>
    %79 = vector.shape_cast %78 : vector<64xf32> to vector<1x64xf32>
    %cst_32 = arith.constant 1.250000e-01 : f32
    %80 = vector.broadcast %cst_32 : f32 to vector<1x64xf32>
    %81 = arith.mulf %76, %80 : vector<1x64xf32>
    %cst_33 = arith.constant 1.250000e-01 : f32
    %82 = vector.broadcast %cst_33 : f32 to vector<1x64xf32>
    %83 = arith.mulf %79, %82 : vector<1x64xf32>
    %84 = arith.mulf %81, %81 : vector<1x64xf32>
    %85 = arith.subf %83, %84 : vector<1x64xf32>
    %cst_34 = arith.constant 0.000000e+00 : f32
    %86 = vector.broadcast %cst_34 : f32 to vector<1x64xf32>
    %87 = arith.maximumf %85, %86 : vector<1x64xf32>
    %88 = vector.broadcast %81 : vector<1x64xf32> to vector<8x64xf32>
    %89 = arith.subf %74, %88 : vector<8x64xf32>
    %cst_35 = arith.constant 9.99999974E-6 : f32
    %90 = vector.broadcast %cst_35 : f32 to vector<1x64xf32>
    %91 = arith.addf %87, %90 : vector<1x64xf32>
    %92 = math.rsqrt %91 : vector<1x64xf32>
    %93 = vector.broadcast %92 : vector<1x64xf32> to vector<8x64xf32>
    %94 = arith.mulf %89, %93 : vector<8x64xf32>
    %95 = arith.addf %94, %48 : vector<8x64xf32>
    %cst_36 = arith.constant 0.000000e+00 : f32
    %96 = vector.broadcast %cst_36 : f32 to vector<8x64xf32>
    %97 = arith.maximumf %95, %96 : vector<8x64xf32>
    %c224 = arith.constant 224 : index
    %c0_37 = arith.constant 0 : index
    %98 = vector.load %arg1[%c224, %c0_37] : memref<552x64xf32, #tpu.memory_space<vmem>>, vector<64x64xf32>
    %cst_38 = arith.constant dense<0.000000e+00> : vector<8x64xf32>
    %99 = tpu.matmul %97, %98, %cst_38 {dimension_numbers = #tpu.dot_dimension_numbers<[1], [0], [0], [1], [0, 0, 1, 1], [], []>} : vector<8x64xf32>, vector<64x64xf32>, vector<8x64xf32> -> vector<8x64xf32>
    %cst_39 = arith.constant dense<0.000000e+00> : vector<64xf32>
    %100 = vector.multi_reduction <add>, %99, %cst_39 [0] : vector<8x64xf32> to vector<64xf32>
    %101 = vector.shape_cast %100 : vector<64xf32> to vector<1x64xf32>
    %102 = arith.mulf %99, %99 : vector<8x64xf32>
    %cst_40 = arith.constant dense<0.000000e+00> : vector<64xf32>
    %103 = vector.multi_reduction <add>, %102, %cst_40 [0] : vector<8x64xf32> to vector<64xf32>
    %104 = vector.shape_cast %103 : vector<64xf32> to vector<1x64xf32>
    %cst_41 = arith.constant 1.250000e-01 : f32
    %105 = vector.broadcast %cst_41 : f32 to vector<1x64xf32>
    %106 = arith.mulf %101, %105 : vector<1x64xf32>
    %cst_42 = arith.constant 1.250000e-01 : f32
    %107 = vector.broadcast %cst_42 : f32 to vector<1x64xf32>
    %108 = arith.mulf %104, %107 : vector<1x64xf32>
    %109 = arith.mulf %106, %106 : vector<1x64xf32>
    %110 = arith.subf %108, %109 : vector<1x64xf32>
    %cst_43 = arith.constant 0.000000e+00 : f32
    %111 = vector.broadcast %cst_43 : f32 to vector<1x64xf32>
    %112 = arith.maximumf %110, %111 : vector<1x64xf32>
    %113 = vector.broadcast %106 : vector<1x64xf32> to vector<8x64xf32>
    %114 = arith.subf %99, %113 : vector<8x64xf32>
    %cst_44 = arith.constant 9.99999974E-6 : f32
    %115 = vector.broadcast %cst_44 : f32 to vector<1x64xf32>
    %116 = arith.addf %112, %115 : vector<1x64xf32>
    %117 = math.rsqrt %116 : vector<1x64xf32>
    %118 = vector.broadcast %117 : vector<1x64xf32> to vector<8x64xf32>
    %119 = arith.mulf %114, %118 : vector<8x64xf32>
    %cst_45 = arith.constant 0.000000e+00 : f32
    %120 = vector.broadcast %cst_45 : f32 to vector<8x64xf32>
    %121 = arith.maximumf %119, %120 : vector<8x64xf32>
    %c288 = arith.constant 288 : index
    %c0_46 = arith.constant 0 : index
    %122 = vector.load %arg1[%c288, %c0_46] : memref<552x64xf32, #tpu.memory_space<vmem>>, vector<64x64xf32>
    %cst_47 = arith.constant dense<0.000000e+00> : vector<8x64xf32>
    %123 = tpu.matmul %121, %122, %cst_47 {dimension_numbers = #tpu.dot_dimension_numbers<[1], [0], [0], [1], [0, 0, 1, 1], [], []>} : vector<8x64xf32>, vector<64x64xf32>, vector<8x64xf32> -> vector<8x64xf32>
    %cst_48 = arith.constant dense<0.000000e+00> : vector<64xf32>
    %124 = vector.multi_reduction <add>, %123, %cst_48 [0] : vector<8x64xf32> to vector<64xf32>
    %125 = vector.shape_cast %124 : vector<64xf32> to vector<1x64xf32>
    %126 = arith.mulf %123, %123 : vector<8x64xf32>
    %cst_49 = arith.constant dense<0.000000e+00> : vector<64xf32>
    %127 = vector.multi_reduction <add>, %126, %cst_49 [0] : vector<8x64xf32> to vector<64xf32>
    %128 = vector.shape_cast %127 : vector<64xf32> to vector<1x64xf32>
    %cst_50 = arith.constant 1.250000e-01 : f32
    %129 = vector.broadcast %cst_50 : f32 to vector<1x64xf32>
    %130 = arith.mulf %125, %129 : vector<1x64xf32>
    %cst_51 = arith.constant 1.250000e-01 : f32
    %131 = vector.broadcast %cst_51 : f32 to vector<1x64xf32>
    %132 = arith.mulf %128, %131 : vector<1x64xf32>
    %133 = arith.mulf %130, %130 : vector<1x64xf32>
    %134 = arith.subf %132, %133 : vector<1x64xf32>
    %cst_52 = arith.constant 0.000000e+00 : f32
    %135 = vector.broadcast %cst_52 : f32 to vector<1x64xf32>
    %136 = arith.maximumf %134, %135 : vector<1x64xf32>
    %137 = vector.broadcast %130 : vector<1x64xf32> to vector<8x64xf32>
    %138 = arith.subf %123, %137 : vector<8x64xf32>
    %cst_53 = arith.constant 9.99999974E-6 : f32
    %139 = vector.broadcast %cst_53 : f32 to vector<1x64xf32>
    %140 = arith.addf %136, %139 : vector<1x64xf32>
    %141 = math.rsqrt %140 : vector<1x64xf32>
    %142 = vector.broadcast %141 : vector<1x64xf32> to vector<8x64xf32>
    %143 = arith.mulf %138, %142 : vector<8x64xf32>
    %144 = arith.addf %143, %97 : vector<8x64xf32>
    %cst_54 = arith.constant 0.000000e+00 : f32
    %145 = vector.broadcast %cst_54 : f32 to vector<8x64xf32>
    %146 = arith.maximumf %144, %145 : vector<8x64xf32>
    %c352 = arith.constant 352 : index
    %c0_55 = arith.constant 0 : index
    %147 = vector.load %arg1[%c352, %c0_55] : memref<552x64xf32, #tpu.memory_space<vmem>>, vector<64x64xf32>
    %cst_56 = arith.constant dense<0.000000e+00> : vector<8x64xf32>
    %148 = tpu.matmul %146, %147, %cst_56 {dimension_numbers = #tpu.dot_dimension_numbers<[1], [0], [0], [1], [0, 0, 1, 1], [], []>} : vector<8x64xf32>, vector<64x64xf32>, vector<8x64xf32> -> vector<8x64xf32>
    %cst_57 = arith.constant dense<0.000000e+00> : vector<64xf32>
    %149 = vector.multi_reduction <add>, %148, %cst_57 [0] : vector<8x64xf32> to vector<64xf32>
    %150 = vector.shape_cast %149 : vector<64xf32> to vector<1x64xf32>
    %151 = arith.mulf %148, %148 : vector<8x64xf32>
    %cst_58 = arith.constant dense<0.000000e+00> : vector<64xf32>
    %152 = vector.multi_reduction <add>, %151, %cst_58 [0] : vector<8x64xf32> to vector<64xf32>
    %153 = vector.shape_cast %152 : vector<64xf32> to vector<1x64xf32>
    %cst_59 = arith.constant 1.250000e-01 : f32
    %154 = vector.broadcast %cst_59 : f32 to vector<1x64xf32>
    %155 = arith.mulf %150, %154 : vector<1x64xf32>
    %cst_60 = arith.constant 1.250000e-01 : f32
    %156 = vector.broadcast %cst_60 : f32 to vector<1x64xf32>
    %157 = arith.mulf %153, %156 : vector<1x64xf32>
    %158 = arith.mulf %155, %155 : vector<1x64xf32>
    %159 = arith.subf %157, %158 : vector<1x64xf32>
    %cst_61 = arith.constant 0.000000e+00 : f32
    %160 = vector.broadcast %cst_61 : f32 to vector<1x64xf32>
    %161 = arith.maximumf %159, %160 : vector<1x64xf32>
    %162 = vector.broadcast %155 : vector<1x64xf32> to vector<8x64xf32>
    %163 = arith.subf %148, %162 : vector<8x64xf32>
    %cst_62 = arith.constant 9.99999974E-6 : f32
    %164 = vector.broadcast %cst_62 : f32 to vector<1x64xf32>
    %165 = arith.addf %161, %164 : vector<1x64xf32>
    %166 = math.rsqrt %165 : vector<1x64xf32>
    %167 = vector.broadcast %166 : vector<1x64xf32> to vector<8x64xf32>
    %168 = arith.mulf %163, %167 : vector<8x64xf32>
    %cst_63 = arith.constant 0.000000e+00 : f32
    %169 = vector.broadcast %cst_63 : f32 to vector<8x64xf32>
    %170 = arith.maximumf %168, %169 : vector<8x64xf32>
    %c416 = arith.constant 416 : index
    %c0_64 = arith.constant 0 : index
    %171 = vector.load %arg1[%c416, %c0_64] : memref<552x64xf32, #tpu.memory_space<vmem>>, vector<64x64xf32>
    %cst_65 = arith.constant dense<0.000000e+00> : vector<8x64xf32>
    %172 = tpu.matmul %170, %171, %cst_65 {dimension_numbers = #tpu.dot_dimension_numbers<[1], [0], [0], [1], [0, 0, 1, 1], [], []>} : vector<8x64xf32>, vector<64x64xf32>, vector<8x64xf32> -> vector<8x64xf32>
    %cst_66 = arith.constant dense<0.000000e+00> : vector<64xf32>
    %173 = vector.multi_reduction <add>, %172, %cst_66 [0] : vector<8x64xf32> to vector<64xf32>
    %174 = vector.shape_cast %173 : vector<64xf32> to vector<1x64xf32>
    %175 = arith.mulf %172, %172 : vector<8x64xf32>
    %cst_67 = arith.constant dense<0.000000e+00> : vector<64xf32>
    %176 = vector.multi_reduction <add>, %175, %cst_67 [0] : vector<8x64xf32> to vector<64xf32>
    %177 = vector.shape_cast %176 : vector<64xf32> to vector<1x64xf32>
    %cst_68 = arith.constant 1.250000e-01 : f32
    %178 = vector.broadcast %cst_68 : f32 to vector<1x64xf32>
    %179 = arith.mulf %174, %178 : vector<1x64xf32>
    %cst_69 = arith.constant 1.250000e-01 : f32
    %180 = vector.broadcast %cst_69 : f32 to vector<1x64xf32>
    %181 = arith.mulf %177, %180 : vector<1x64xf32>
    %182 = arith.mulf %179, %179 : vector<1x64xf32>
    %183 = arith.subf %181, %182 : vector<1x64xf32>
    %cst_70 = arith.constant 0.000000e+00 : f32
    %184 = vector.broadcast %cst_70 : f32 to vector<1x64xf32>
    %185 = arith.maximumf %183, %184 : vector<1x64xf32>
    %186 = vector.broadcast %179 : vector<1x64xf32> to vector<8x64xf32>
    %187 = arith.subf %172, %186 : vector<8x64xf32>
    %cst_71 = arith.constant 9.99999974E-6 : f32
    %188 = vector.broadcast %cst_71 : f32 to vector<1x64xf32>
    %189 = arith.addf %185, %188 : vector<1x64xf32>
    %190 = math.rsqrt %189 : vector<1x64xf32>
    %191 = vector.broadcast %190 : vector<1x64xf32> to vector<8x64xf32>
    %192 = arith.mulf %187, %191 : vector<8x64xf32>
    %193 = arith.addf %192, %146 : vector<8x64xf32>
    %cst_72 = arith.constant 0.000000e+00 : f32
    %194 = vector.broadcast %cst_72 : f32 to vector<8x64xf32>
    %195 = arith.maximumf %193, %194 : vector<8x64xf32>
    %c480 = arith.constant 480 : index
    %c0_73 = arith.constant 0 : index
    %196 = vector.load %arg1[%c480, %c0_73] : memref<552x64xf32, #tpu.memory_space<vmem>>, vector<64x64xf32>
    %cst_74 = arith.constant dense<0.000000e+00> : vector<8x64xf32>
    %197 = tpu.matmul %195, %196, %cst_74 {dimension_numbers = #tpu.dot_dimension_numbers<[1], [0], [0], [1], [0, 0, 1, 1], [], []>} : vector<8x64xf32>, vector<64x64xf32>, vector<8x64xf32> -> vector<8x64xf32>
    %c544 = arith.constant 544 : index
    %c0_75 = arith.constant 0 : index
    %198 = vector.load %arg1[%c544, %c0_75] : memref<552x64xf32, #tpu.memory_space<vmem>>, vector<1x64xf32>
    %199 = vector.broadcast %198 : vector<1x64xf32> to vector<8x64xf32>
    %200 = arith.addf %197, %199 : vector<8x64xf32>
    %201 = vector.extract_strided_slice %200 {offsets = [0, 0], sizes = [8, 3], strides = [1, 1]} : vector<8x64xf32> to vector<8x3xf32>
    %c0_76 = arith.constant 0 : index
    %c0_77 = arith.constant 0 : index
    %202 = vector.load %arg2[%c0_76, %c0_77] : memref<8x3xf32, #tpu.memory_space<vmem>>, vector<8x3xf32>
    tpu.vector_store %arg2[%c0_76, %c0_77], %201 {strides = array<i32>} : memref<8x3xf32, #tpu.memory_space<vmem>>, vector<8x3xf32>,
    return
  }
}

</mosaic_0001>

<llo_original>
// kernel: resnet_forward.1
$region0: #{resnet_forward.1}
  #allocation0 [shape = 'u32[]', space=smem, size = 0x4, offset = 0x4, fixed_abs, tag = 'smem constant byte address 0x4 - core index']
  #allocation1 [shape = 'u32[144,128]{1,0:T(1,128)}', space=vmem, size = 0x12000, scoped, tag = 'internal scratch']
  %s0 = inlined_call_operand.vmem [shape: f32[8,32], index: 0, kind: input, shape index: {}]
  %s1 = inlined_call_operand.vmem [shape: f32[552,64], index: 1, kind: input, shape index: {}]
  %s2 = inlined_call_operand.vmem [shape: f32[8,3], index: 2, kind: output, shape index: {}]
  %s3 = sld [smem:[#allocation0]]
  $region18: #{resnet_forward.1} parent=0
    _
  %s5 = ssub.s32 1, %s3
  %s6 = scalar_select 0, %s5, %s3
  // Predicated region
  $region2: #{resnet_forward.1} parent=0 // pred_check
    _
  $region3: #{resnet_forward.1} parent=0 // pred_check_branch
    %8 = sbr.rel (0) target = $region5
  $region4: #{resnet_forward.1} parent=0 // pred_region
    _
  $region5: #{resnet_forward.1} parent=0 // pred_fallthru
    _
  // Predicated region
  $region6: #{resnet_forward.1} parent=0 // pred_check
    _
  $region7: #{resnet_forward.1} parent=0 // pred_check_branch
    %10 = sbr.rel (0) target = $region9
  $region8: #{resnet_forward.1} parent=0 // pred_region
    _
  $region9: #{resnet_forward.1} parent=0 // pred_fallthru
    _
  %v11 = vld [vmem:[%s0] sm:$0xff]
  %v12 = vld [vmem:[%s1] sm:$0xff]
  %v13 = vld [vmem:[%s1 + $0x8] sm:$0xff]
  %v14 = vld [vmem:[%s1 + $0x10] sm:$0xff]
  %v15 = vld [vmem:[%s1 + $0x18] sm:$0xff]
  %vm16 = vcmask 261120
  %v18 = vsel %vm16, %v11, 0
  %20 = vmatprep.subr.mxu0 0.0
  %21 = vmatpush1.msra.mxu0 %v12
  %22 = vmatprep.subr.mxu0 0.0
  %23 = vmatpush1.msra.mxu0 %v13
  %24 = vmatprep.subr.mxu0 0.0
  %25 = vmatpush1.msra.mxu0 %v14
  %26 = vmatprep.subr.mxu0 0.0
  %27 = vmatpush1.msra.mxu0 %v15
  %28 = vmatprep.subr.mxu0 0.0
  %29 = vmatpush1.msra.mxu0 0.0
  %30 = vmatprep.subr.mxu0 0.0
  %31 = vmatpush1.msra.mxu0 0.0
  %32 = vmatprep.subr.mxu0 0.0
  %33 = vmatpush1.msra.mxu0 0.0
  %34 = vmatprep.subr.mxu0 0.0
  %35 = vmatpush1.msra.mxu0 0.0
  %36 = vmatprep.subr.mxu0 0.0
  %37 = vmatpush1.msra.mxu0 0.0
  %38 = vmatprep.subr.mxu0 0.0
  %39 = vmatpush1.msra.mxu0 0.0
  %40 = vmatprep.subr.mxu0 0.0
  %41 = vmatpush1.msra.mxu0 0.0
  %42 = vmatprep.subr.mxu0 0.0
  %43 = vmatpush1.msra.mxu0 0.0
  %44 = vmatprep.subr.mxu0 0.0
  %45 = vmatpush1.msra.mxu0 0.0
  %46 = vmatprep.subr.mxu0 0.0
  %47 = vmatpush1.msra.mxu0 0.0
  %48 = vmatprep.subr.mxu0 0.0
  %49 = vmatpush1.msra.mxu0 0.0
  %50 = vmatprep.subr.mxu0 0.0
  %51 = vmatpush1.msra.mxu0 0.0
  %52 = vmatprep.subr.mxu0 0.0
  %53 = vmatpush1.msra.mxu0 0.0
  %54 = vmatprep.subr.mxu0 0.0
  %55 = vmatpush1.msra.mxu0 0.0
  %56 = vmatprep.subr.mxu0 0.0
  %57 = vmatpush1.msra.mxu0 0.0
  %58 = vmatprep.subr.mxu0 0.0
  %59 = vmatpush1.msra.mxu0 0.0
  %60 = vmatprep.subr.mxu0 0.0
  %61 = vmatpush1.msra.mxu0 0.0
  %62 = vmatprep.subr.mxu0 0.0
  %63 = vmatpush1.msra.mxu0 0.0
  %64 = vmatprep.subr.mxu0 0.0
  %65 = vmatpush1.msra.mxu0 0.0
  %66 = vmatprep.subr.mxu0 0.0
  %67 = vmatpush1.msra.mxu0 0.0
  %68 = vmatprep.subr.mxu0 0.0
  %69 = vmatpush1.msra.mxu0 0.0
  %70 = vmatprep.subr.mxu0 0.0
  %71 = vmatpush1.msra.mxu0 0.0
  %72 = vmatprep.subr.mxu0 0.0
  %73 = vmatpush1.msra.mxu0 0.0
  %74 = vmatprep.subr.mxu0 0.0
  %75 = vmatpush1.msra.mxu0 0.0
  %76 = vmatprep.subr.mxu0 0.0
  %77 = vmatpush1.msra.mxu0 0.0
  %78 = vmatprep.subr.mxu0 0.0
  %79 = vmatpush1.msra.mxu0 0.0
  %80 = vmatprep.subr.mxu0 0.0
  %81 = vmatpush1.msra.mxu0 0.0
  %82 = vmatprep.subr.mxu0 0.0
  %83 = vmatpush1.msra.mxu0 0.0
  %84 = vmatprep.mubr.f32.mxu0 0.0
  %85 = vmatmul.mubr.f32.gmra.mrb[0].mxu0 %v18
  %v86 = vpop.f32.mrb[0].mxu0
  %v87 = vadd.f32 0.0, %v86
  %v88 = vpop.f32.mrb[0].mxu0
  %89 = vdwg.mxu0
  %vm90 = vcmask 523264
  %v91 = vsel %vm90, %v87, 0.0
  %v92 = vrot.slane %v91, 4
  %v93 = vadd.f32 %v91, %v92
  %v94 = vrot.slane %v93, 2
  %v95 = vadd.f32 %v93, %v94
  %v96 = vrot.slane %v95, 1
  %v97 = vadd.f32 %v95, %v96
  %v98 = vmul.f32 %v87, %v87
  %v99 = vsel %vm90, %v98, 0.0
  %v100 = vrot.slane %v99, 4
  %v101 = vadd.f32 %v99, %v100
  %v102 = vrot.slane %v101, 2
  %v103 = vadd.f32 %v101, %v102
  %v104 = vrot.slane %v103, 1
  %v105 = vadd.f32 %v103, %v104
  %v106 = vmul.f32 %v97, 0.125
  %v107 = vmul.f32 %v105, 0.125
  %v108 = vmul.f32 %v106, %v106
  %v109 = vsub.f32 %v107, %v108
  %v110 = vmax.f32 %v109, 0.0
  %v111 = vsub.f32 %v87, %v106
  %v112 = vadd.f32 %v110, 1e-05
  %v113 = vrsqrt.pop %v112
  %v114 = vmul.f32 %v111, %v113
  %v115 = vmax.f32 %v114, 0.0
  %v116 = vld [vmem:[%s1 + $0x20] sm:$0xff]
  %v117 = vld [vmem:[%s1 + $0x28] sm:$0xff]
  %v118 = vld [vmem:[%s1 + $0x30] sm:$0xff]
  %v119 = vld [vmem:[%s1 + $0x38] sm:$0xff]
  %v120 = vld [vmem:[%s1 + $0x40] sm:$0xff]
  %v121 = vld [vmem:[%s1 + $0x48] sm:$0xff]
  %v122 = vld [vmem:[%s1 + $0x50] sm:$0xff]
  %v123 = vld [vmem:[%s1 + $0x58] sm:$0xff]
  %v125 = vsel %vm90, %v115, 0
  %127 = vmatprep.subr.mxu0 0.0
  %128 = vmatpush1.msra.mxu0 %v116
  %129 = vmatprep.subr.mxu0 0.0
  %130 = vmatpush1.msra.mxu0 %v117
  %131 = vmatprep.subr.mxu0 0.0
  %132 = vmatpush1.msra.mxu0 %v118
  %133 = vmatprep.subr.mxu0 0.0
  %134 = vmatpush1.msra.mxu0 %v119
  %135 = vmatprep.subr.mxu0 0.0
  %136 = vmatpush1.msra.mxu0 %v120
  %137 = vmatprep.subr.mxu0 0.0
  %138 = vmatpush1.msra.mxu0 %v121
  %139 = vmatprep.subr.mxu0 0.0
  %140 = vmatpush1.msra.mxu0 %v122
  %141 = vmatprep.subr.mxu0 0.0
  %142 = vmatpush1.msra.mxu0 %v123
  %143 = vmatprep.subr.mxu0 0.0
  %144 = vmatpush1.msra.mxu0 0.0
  %145 = vmatprep.subr.mxu0 0.0
  %146 = vmatpush1.msra.mxu0 0.0
  %147 = vmatprep.subr.mxu0 0.0
  %148 = vmatpush1.msra.mxu0 0.0
  %149 = vmatprep.subr.mxu0 0.0
  %150 = vmatpush1.msra.mxu0 0.0
  %151 = vmatprep.subr.mxu0 0.0
  %152 = vmatpush1.msra.mxu0 0.0
  %153 = vmatprep.subr.mxu0 0.0
  %154 = vmatpush1.msra.mxu0 0.0
  %155 = vmatprep.subr.mxu0 0.0
  %156 = vmatpush1.msra.mxu0 0.0
  %157 = vmatprep.subr.mxu0 0.0
  %158 = vmatpush1.msra.mxu0 0.0
  %159 = vmatprep.subr.mxu0 0.0
  %160 = vmatpush1.msra.mxu0 0.0
  %161 = vmatprep.subr.mxu0 0.0
  %162 = vmatpush1.msra.mxu0 0.0
  %163 = vmatprep.subr.mxu0 0.0
  %164 = vmatpush1.msra.mxu0 0.0
  %165 = vmatprep.subr.mxu0 0.0
  %166 = vmatpush1.msra.mxu0 0.0
  %167 = vmatprep.subr.mxu0 0.0
  %168 = vmatpush1.msra.mxu0 0.0
  %169 = vmatprep.subr.mxu0 0.0
  %170 = vmatpush1.msra.mxu0 0.0
  %171 = vmatprep.subr.mxu0 0.0
  %172 = vmatpush1.msra.mxu0 0.0
  %173 = vmatprep.subr.mxu0 0.0
  %174 = vmatpush1.msra.mxu0 0.0
  %175 = vmatprep.subr.mxu0 0.0
  %176 = vmatpush1.msra.mxu0 0.0
  %177 = vmatprep.subr.mxu0 0.0
  %178 = vmatpush1.msra.mxu0 0.0
  %179 = vmatprep.subr.mxu0 0.0
  %180 = vmatpush1.msra.mxu0 0.0
  %181 = vmatprep.subr.mxu0 0.0
  %182 = vmatpush1.msra.mxu0 0.0
  %183 = vmatprep.subr.mxu0 0.0
  %184 = vmatpush1.msra.mxu0 0.0
  %185 = vmatprep.subr.mxu0 0.0
  %186 = vmatpush1.msra.mxu0 0.0
  %187 = vmatprep.subr.mxu0 0.0
  %188 = vmatpush1.msra.mxu0 0.0
  %189 = vmatprep.subr.mxu0 0.0
  %190 = vmatpush1.msra.mxu0 0.0
  %191 = vmatprep.mubr.f32.mxu0 0.0
  %192 = vmatmul.mubr.f32.gmra.mrb[0].mxu0 %v125
  %v193 = vpop.f32.mrb[0].mxu0
  %v194 = vadd.f32 0.0, %v193
  %v195 = vpop.f32.mrb[0].mxu0
  %196 = vdwg.mxu0
  %v197 = vsel %vm90, %v194, 0.0
  %v198 = vrot.slane %v197, 4
  %v199 = vadd.f32 %v197, %v198
  %v200 = vrot.slane %v199, 2
  %v201 = vadd.f32 %v199, %v200
  %v202 = vrot.slane %v201, 1
  %v203 = vadd.f32 %v201, %v202
  %v204 = vmul.f32 %v194, %v194
  %v205 = vsel %vm90, %v204, 0.0
  %v206 = vrot.slane %v205, 4
  %v207 = vadd.f32 %v205, %v206
  %v208 = vrot.slane %v207, 2
  %v209 = vadd.f32 %v207, %v208
  %v210 = vrot.slane %v209, 1
  %v211 = vadd.f32 %v209, %v210
  %v212 = vmul.f32 %v203, 0.125
  %v213 = vmul.f32 %v211, 0.125
  %v214 = vmul.f32 %v212, %v212
  %v215 = vsub.f32 %v213, %v214
  %v216 = vmax.f32 %v215, 0.0
  %v217 = vsub.f32 %v194, %v212
  %v218 = vadd.f32 %v216, 1e-05
  %v219 = vrsqrt.pop %v218
  %v220 = vmul.f32 %v217, %v219
  %v221 = vmax.f32 %v220, 0.0
  %v222 = vld [vmem:[%s1 + $0x60] sm:$0xff]
  %v223 = vld [vmem:[%s1 + $0x68] sm:$0xff]
  %v224 = vld [vmem:[%s1 + $0x70] sm:$0xff]
  %v225 = vld [vmem:[%s1 + $0x78] sm:$0xff]
  %v226 = vld [vmem:[%s1 + $0x80] sm:$0xff]
  %v227 = vld [vmem:[%s1 + $0x88] sm:$0xff]
  %v228 = vld [vmem:[%s1 + $0x90] sm:$0xff]
  %v229 = vld [vmem:[%s1 + $0x98] sm:$0xff]
  %v231 = vsel %vm90, %v221, 0
  %233 = vmatprep.subr.mxu0 0.0
  %234 = vmatpush1.msra.mxu0 %v222
  %235 = vmatprep.subr.mxu0 0.0
  %236 = vmatpush1.msra.mxu0 %v223
  %237 = vmatprep.subr.mxu0 0.0
  %238 = vmatpush1.msra.mxu0 %v224
  %239 = vmatprep.subr.mxu0 0.0
  %240 = vmatpush1.msra.mxu0 %v225
  %241 = vmatprep.subr.mxu0 0.0
  %242 = vmatpush1.msra.mxu0 %v226
  %243 = vmatprep.subr.mxu0 0.0
  %244 = vmatpush1.msra.mxu0 %v227
  %245 = vmatprep.subr.mxu0 0.0
  %246 = vmatpush1.msra.mxu0 %v228
  %247 = vmatprep.subr.mxu0 0.0
  %248 = vmatpush1.msra.mxu0 %v229
  %249 = vmatprep.subr.mxu0 0.0
  %250 = vmatpush1.msra.mxu0 0.0
  %251 = vmatprep.subr.mxu0 0.0
  %252 = vmatpush1.msra.mxu0 0.0
  %253 = vmatprep.subr.mxu0 0.0
  %254 = vmatpush1.msra.mxu0 0.0
  %255 = vmatprep.subr.mxu0 0.0
  %256 = vmatpush1.msra.mxu0 0.0
  %257 = vmatprep.subr.mxu0 0.0
  %258 = vmatpush1.msra.mxu0 0.0
  %259 = vmatprep.subr.mxu0 0.0
  %260 = vmatpush1.msra.mxu0 0.0
  %261 = vmatprep.subr.mxu0 0.0
  %262 = vmatpush1.msra.mxu0 0.0
  %263 = vmatprep.subr.mxu0 0.0
  %264 = vmatpush1.msra.mxu0 0.0
  %265 = vmatprep.subr.mxu0 0.0
  %266 = vmatpush1.msra.mxu0 0.0
  %267 = vmatprep.subr.mxu0 0.0
  %268 = vmatpush1.msra.mxu0 0.0
  %269 = vmatprep.subr.mxu0 0.0
  %270 = vmatpush1.msra.mxu0 0.0
  %271 = vmatprep.subr.mxu0 0.0
  %272 = vmatpush1.msra.mxu0 0.0
  %273 = vmatprep.subr.mxu0 0.0
  %274 = vmatpush1.msra.mxu0 0.0
  %275 = vmatprep.subr.mxu0 0.0
  %276 = vmatpush1.msra.mxu0 0.0
  %277 = vmatprep.subr.mxu0 0.0
  %278 = vmatpush1.msra.mxu0 0.0
  %279 = vmatprep.subr.mxu0 0.0
  %280 = vmatpush1.msra.mxu0 0.0
  %281 = vmatprep.subr.mxu0 0.0
  %282 = vmatpush1.msra.mxu0 0.0
  %283 = vmatprep.subr.mxu0 0.0
  %284 = vmatpush1.msra.mxu0 0.0
  %285 = vmatprep.subr.mxu0 0.0
  %286 = vmatpush1.msra.mxu0 0.0
  %287 = vmatprep.subr.mxu0 0.0
  %288 = vmatpush1.msra.mxu0 0.0
  %289 = vmatprep.subr.mxu0 0.0
  %290 = vmatpush1.msra.mxu0 0.0
  %291 = vmatprep.subr.mxu0 0.0
  %292 = vmatpush1.msra.mxu0 0.0
  %293 = vmatprep.subr.mxu0 0.0
  %294 = vmatpush1.msra.mxu0 0.0
  %295 = vmatprep.subr.mxu0 0.0
  %296 = vmatpush1.msra.mxu0 0.0
  %297 = vmatprep.mubr.f32.mxu0 0.0
  %298 = vmatmul.mubr.f32.gmra.mrb[0].mxu0 %v231
  %v299 = vpop.f32.mrb[0].mxu0
  %v300 = vadd.f32 0.0, %v299
  %v301 = vpop.f32.mrb[0].mxu0
  %302 = vdwg.mxu0
  %v303 = vsel %vm90, %v300, 0.0
  %v304 = vrot.slane %v303, 4
  %v305 = vadd.f32 %v303, %v304
  %v306 = vrot.slane %v305, 2
  %v307 = vadd.f32 %v305, %v306
  %v308 = vrot.slane %v307, 1
  %v309 = vadd.f32 %v307, %v308
  %v310 = vmul.f32 %v300, %v300
  %v311 = vsel %vm90, %v310, 0.0
  %v312 = vrot.slane %v311, 4
  %v313 = vadd.f32 %v311, %v312
  %v314 = vrot.slane %v313, 2
  %v315 = vadd.f32 %v313, %v314
  %v316 = vrot.slane %v315, 1
  %v317 = vadd.f32 %v315, %v316
  %v318 = vmul.f32 %v309, 0.125
  %v319 = vmul.f32 %v317, 0.125
  %v320 = vmul.f32 %v318, %v318
  %v321 = vsub.f32 %v319, %v320
  %v322 = vmax.f32 %v321, 0.0
  %v323 = vsub.f32 %v300, %v318
  %v324 = vadd.f32 %v322, 1e-05
  %v325 = vrsqrt.pop %v324
  %v326 = vmul.f32 %v323, %v325
  %v327 = vmax.f32 %v326, 0.0
  %v328 = vld [vmem:[%s1 + $0xa0] sm:$0xff]
  %v329 = vld [vmem:[%s1 + $0xa8] sm:$0xff]
  %v330 = vld [vmem:[%s1 + $0xb0] sm:$0xff]
  %v331 = vld [vmem:[%s1 + $0xb8] sm:$0xff]
  %v332 = vld [vmem:[%s1 + $0xc0] sm:$0xff]
  %v333 = vld [vmem:[%s1 + $0xc8] sm:$0xff]
  %v334 = vld [vmem:[%s1 + $0xd0] sm:$0xff]
  %v335 = vld [vmem:[%s1 + $0xd8] sm:$0xff]
  %v337 = vsel %vm90, %v327, 0
  %339 = vmatprep.subr.mxu0 0.0
  %340 = vmatpush1.msra.mxu0 %v328
  %341 = vmatprep.subr.mxu0 0.0
  %342 = vmatpush1.msra.mxu0 %v329
  %343 = vmatprep.subr.mxu0 0.0
  %344 = vmatpush1.msra.mxu0 %v330
  %345 = vmatprep.subr.mxu0 0.0
  %346 = vmatpush1.msra.mxu0 %v331
  %347 = vmatprep.subr.mxu0 0.0
  %348 = vmatpush1.msra.mxu0 %v332
  %349 = vmatprep.subr.mxu0 0.0
  %350 = vmatpush1.msra.mxu0 %v333
  %351 = vmatprep.subr.mxu0 0.0
  %352 = vmatpush1.msra.mxu0 %v334
  %353 = vmatprep.subr.mxu0 0.0
  %354 = vmatpush1.msra.mxu0 %v335
  %355 = vmatprep.subr.mxu0 0.0
  %356 = vmatpush1.msra.mxu0 0.0
  %357 = vmatprep.subr.mxu0 0.0
  %358 = vmatpush1.msra.mxu0 0.0
  %359 = vmatprep.subr.mxu0 0.0
  %360 = vmatpush1.msra.mxu0 0.0
  %361 = vmatprep.subr.mxu0 0.0
  %362 = vmatpush1.msra.mxu0 0.0
  %363 = vmatprep.subr.mxu0 0.0
  %364 = vmatpush1.msra.mxu0 0.0
  %365 = vmatprep.subr.mxu0 0.0
  %366 = vmatpush1.msra.mxu0 0.0
  %367 = vmatprep.subr.mxu0 0.0
  %368 = vmatpush1.msra.mxu0 0.0
  %369 = vmatprep.subr.mxu0 0.0
  %370 = vmatpush1.msra.mxu0 0.0
  %371 = vmatprep.subr.mxu0 0.0
  %372 = vmatpush1.msra.mxu0 0.0
  %373 = vmatprep.subr.mxu0 0.0
  %374 = vmatpush1.msra.mxu0 0.0
  %375 = vmatprep.subr.mxu0 0.0
  %376 = vmatpush1.msra.mxu0 0.0
  %377 = vmatprep.subr.mxu0 0.0
  %378 = vmatpush1.msra.mxu0 0.0
  %379 = vmatprep.subr.mxu0 0.0
  %380 = vmatpush1.msra.mxu0 0.0
  %381 = vmatprep.subr.mxu0 0.0
  %382 = vmatpush1.msra.mxu0 0.0
  %383 = vmatprep.subr.mxu0 0.0
  %384 = vmatpush1.msra.mxu0 0.0
  %385 = vmatprep.subr.mxu0 0.0
  %386 = vmatpush1.msra.mxu0 0.0
  %387 = vmatprep.subr.mxu0 0.0
  %388 = vmatpush1.msra.mxu0 0.0
  %389 = vmatprep.subr.mxu0 0.0
  %390 = vmatpush1.msra.mxu0 0.0
  %391 = vmatprep.subr.mxu0 0.0
  %392 = vmatpush1.msra.mxu0 0.0
  %393 = vmatprep.subr.mxu0 0.0
  %394 = vmatpush1.msra.mxu0 0.0
  %395 = vmatprep.subr.mxu0 0.0
  %396 = vmatpush1.msra.mxu0 0.0
  %397 = vmatprep.subr.mxu0 0.0
  %398 = vmatpush1.msra.mxu0 0.0
  %399 = vmatprep.subr.mxu0 0.0
  %400 = vmatpush1.msra.mxu0 0.0
  %401 = vmatprep.subr.mxu0 0.0
  %402 = vmatpush1.msra.mxu0 0.0
  %403 = vmatprep.mubr.f32.mxu0 0.0
  %404 = vmatmul.mubr.f32.gmra.mrb[0].mxu0 %v337
  %v405 = vpop.f32.mrb[0].mxu0
  %v406 = vadd.f32 0.0, %v405
  %v407 = vpop.f32.mrb[0].mxu0
  %408 = vdwg.mxu0
  %v409 = vsel %vm90, %v406, 0.0
  %v410 = vrot.slane %v409, 4
  %v411 = vadd.f32 %v409, %v410
  %v412 = vrot.slane %v411, 2
  %v413 = vadd.f32 %v411, %v412
  %v414 = vrot.slane %v413, 1
  %v415 = vadd.f32 %v413, %v414
  %v416 = vmul.f32 %v406, %v406
  %v417 = vsel %vm90, %v416, 0.0
  %v418 = vrot.slane %v417, 4
  %v419 = vadd.f32 %v417, %v418
  %v420 = vrot.slane %v419, 2
  %v421 = vadd.f32 %v419, %v420
  %v422 = vrot.slane %v421, 1
  %v423 = vadd.f32 %v421, %v422
  %v424 = vmul.f32 %v415, 0.125
  %v425 = vmul.f32 %v423, 0.125
  %v426 = vmul.f32 %v424, %v424
  %v427 = vsub.f32 %v425, %v426
  %v428 = vmax.f32 %v427, 0.0
  %v429 = vsub.f32 %v406, %v424
  %v430 = vadd.f32 %v428, 1e-05
  %v431 = vrsqrt.pop %v430
  %v432 = vmul.f32 %v429, %v431
  %v433 = vadd.f32 %v432, %v221
  %v434 = vmax.f32 %v433, 0.0
  %v435 = vld [vmem:[%s1 + $0xe0] sm:$0xff]
  %v436 = vld [vmem:[%s1 + $0xe8] sm:$0xff]
  %v437 = vld [vmem:[%s1 + $0xf0] sm:$0xff]
  %v438 = vld [vmem:[%s1 + $0xf8] sm:$0xff]
  %v439 = vld [vmem:[%s1 + $0x100] sm:$0xff]
  %v440 = vld [vmem:[%s1 + $0x108] sm:$0xff]
  %v441 = vld [vmem:[%s1 + $0x110] sm:$0xff]
  %v442 = vld [vmem:[%s1 + $0x118] sm:$0xff]
  %v444 = vsel %vm90, %v434, 0
  %446 = vmatprep.subr.mxu0 0.0
  %447 = vmatpush1.msra.mxu0 %v435
  %448 = vmatprep.subr.mxu0 0.0
  %449 = vmatpush1.msra.mxu0 %v436
  %450 = vmatprep.subr.mxu0 0.0
  %451 = vmatpush1.msra.mxu0 %v437
  %452 = vmatprep.subr.mxu0 0.0
  %453 = vmatpush1.msra.mxu0 %v438
  %454 = vmatprep.subr.mxu0 0.0
  %455 = vmatpush1.msra.mxu0 %v439
  %456 = vmatprep.subr.mxu0 0.0
  %457 = vmatpush1.msra.mxu0 %v440
  %458 = vmatprep.subr.mxu0 0.0
  %459 = vmatpush1.msra.mxu0 %v441
  %460 = vmatprep.subr.mxu0 0.0
  %461 = vmatpush1.msra.mxu0 %v442
  %462 = vmatprep.subr.mxu0 0.0
  %463 = vmatpush1.msra.mxu0 0.0
  %464 = vmatprep.subr.mxu0 0.0
  %465 = vmatpush1.msra.mxu0 0.0
  %466 = vmatprep.subr.mxu0 0.0
  %467 = vmatpush1.msra.mxu0 0.0
  %468 = vmatprep.subr.mxu0 0.0
  %469 = vmatpush1.msra.mxu0 0.0
  %470 = vmatprep.subr.mxu0 0.0
  %471 = vmatpush1.msra.mxu0 0.0
  %472 = vmatprep.subr.mxu0 0.0
  %473 = vmatpush1.msra.mxu0 0.0
  %474 = vmatprep.subr.mxu0 0.0
  %475 = vmatpush1.msra.mxu0 0.0
  %476 = vmatprep.subr.mxu0 0.0
  %477 = vmatpush1.msra.mxu0 0.0
  %478 = vmatprep.subr.mxu0 0.0
  %479 = vmatpush1.msra.mxu0 0.0
  %480 = vmatprep.subr.mxu0 0.0
  %481 = vmatpush1.msra.mxu0 0.0
  %482 = vmatprep.subr.mxu0 0.0
  %483 = vmatpush1.msra.mxu0 0.0
  %484 = vmatprep.subr.mxu0 0.0
  %485 = vmatpush1.msra.mxu0 0.0
  %486 = vmatprep.subr.mxu0 0.0
  %487 = vmatpush1.msra.mxu0 0.0
  %488 = vmatprep.subr.mxu0 0.0
  %489 = vmatpush1.msra.mxu0 0.0
  %490 = vmatprep.subr.mxu0 0.0
  %491 = vmatpush1.msra.mxu0 0.0
  %492 = vmatprep.subr.mxu0 0.0
  %493 = vmatpush1.msra.mxu0 0.0
  %494 = vmatprep.subr.mxu0 0.0
  %495 = vmatpush1.msra.mxu0 0.0
  %496 = vmatprep.subr.mxu0 0.0
  %497 = vmatpush1.msra.mxu0 0.0
  %498 = vmatprep.subr.mxu0 0.0
  %499 = vmatpush1.msra.mxu0 0.0
  %500 = vmatprep.subr.mxu0 0.0
  %501 = vmatpush1.msra.mxu0 0.0
  %502 = vmatprep.subr.mxu0 0.0
  %503 = vmatpush1.msra.mxu0 0.0
  %504 = vmatprep.subr.mxu0 0.0
  %505 = vmatpush1.msra.mxu0 0.0
  %506 = vmatprep.subr.mxu0 0.0
  %507 = vmatpush1.msra.mxu0 0.0
  %508 = vmatprep.subr.mxu0 0.0
  %509 = vmatpush1.msra.mxu0 0.0
  %510 = vmatprep.mubr.f32.mxu0 0.0
  %511 = vmatmul.mubr.f32.gmra.mrb[0].mxu0 %v444
  %v512 = vpop.f32.mrb[0].mxu0
  %v513 = vadd.f32 0.0, %v512
  %v514 = vpop.f32.mrb[0].mxu0
  %515 = vdwg.mxu0
  %v516 = vsel %vm90, %v513, 0.0
  %v517 = vrot.slane %v516, 4
  %v518 = vadd.f32 %v516, %v517
  %v519 = vrot.slane %v518, 2
  %v520 = vadd.f32 %v518, %v519
  %v521 = vrot.slane %v520, 1
  %v522 = vadd.f32 %v520, %v521
  %v523 = vmul.f32 %v513, %v513
  %v524 = vsel %vm90, %v523, 0.0
  %v525 = vrot.slane %v524, 4
  %v526 = vadd.f32 %v524, %v525
  %v527 = vrot.slane %v526, 2
  %v528 = vadd.f32 %v526, %v527
  %v529 = vrot.slane %v528, 1
  %v530 = vadd.f32 %v528, %v529
  %v531 = vmul.f32 %v522, 0.125
  %v532 = vmul.f32 %v530, 0.125
  %v533 = vmul.f32 %v531, %v531
  %v534 = vsub.f32 %v532, %v533
  %v535 = vmax.f32 %v534, 0.0
  %v536 = vsub.f32 %v513, %v531
  %v537 = vadd.f32 %v535, 1e-05
  %v538 = vrsqrt.pop %v537
  %v539 = vmul.f32 %v536, %v538
  %v540 = vmax.f32 %v539, 0.0
  %v541 = vld [vmem:[%s1 + $0x120] sm:$0xff]
  %v542 = vld [vmem:[%s1 + $0x128] sm:$0xff]
  %v543 = vld [vmem:[%s1 + $0x130] sm:$0xff]
  %v544 = vld [vmem:[%s1 + $0x138] sm:$0xff]
  %v545 = vld [vmem:[%s1 + $0x140] sm:$0xff]
  %v546 = vld [vmem:[%s1 + $0x148] sm:$0xff]
  %v547 = vld [vmem:[%s1 + $0x150] sm:$0xff]
  %v548 = vld [vmem:[%s1 + $0x158] sm:$0xff]
  %v550 = vsel %vm90, %v540, 0
  %552 = vmatprep.subr.mxu0 0.0
  %553 = vmatpush1.msra.mxu0 %v541
  %554 = vmatprep.subr.mxu0 0.0
  %555 = vmatpush1.msra.mxu0 %v542
  %556 = vmatprep.subr.mxu0 0.0
  %557 = vmatpush1.msra.mxu0 %v543
  %558 = vmatprep.subr.mxu0 0.0
  %559 = vmatpush1.msra.mxu0 %v544
  %560 = vmatprep.subr.mxu0 0.0
  %561 = vmatpush1.msra.mxu0 %v545
  %562 = vmatprep.subr.mxu0 0.0
  %563 = vmatpush1.msra.mxu0 %v546
  %564 = vmatprep.subr.mxu0 0.0
  %565 = vmatpush1.msra.mxu0 %v547
  %566 = vmatprep.subr.mxu0 0.0
  %567 = vmatpush1.msra.mxu0 %v548
  %568 = vmatprep.subr.mxu0 0.0
  %569 = vmatpush1.msra.mxu0 0.0
  %570 = vmatprep.subr.mxu0 0.0
  %571 = vmatpush1.msra.mxu0 0.0
  %572 = vmatprep.subr.mxu0 0.0
  %573 = vmatpush1.msra.mxu0 0.0
  %574 = vmatprep.subr.mxu0 0.0
  %575 = vmatpush1.msra.mxu0 0.0
  %576 = vmatprep.subr.mxu0 0.0
  %577 = vmatpush1.msra.mxu0 0.0
  %578 = vmatprep.subr.mxu0 0.0
  %579 = vmatpush1.msra.mxu0 0.0
  %580 = vmatprep.subr.mxu0 0.0
  %581 = vmatpush1.msra.mxu0 0.0
  %582 = vmatprep.subr.mxu0 0.0
  %583 = vmatpush1.msra.mxu0 0.0
  %584 = vmatprep.subr.mxu0 0.0
  %585 = vmatpush1.msra.mxu0 0.0
  %586 = vmatprep.subr.mxu0 0.0
  %587 = vmatpush1.msra.mxu0 0.0
  %588 = vmatprep.subr.mxu0 0.0
  %589 = vmatpush1.msra.mxu0 0.0
  %590 = vmatprep.subr.mxu0 0.0
  %591 = vmatpush1.msra.mxu0 0.0
  %592 = vmatprep.subr.mxu0 0.0
  %593 = vmatpush1.msra.mxu0 0.0
  %594 = vmatprep.subr.mxu0 0.0
  %595 = vmatpush1.msra.mxu0 0.0
  %596 = vmatprep.subr.mxu0 0.0
  %597 = vmatpush1.msra.mxu0 0.0
  %598 = vmatprep.subr.mxu0 0.0
  %599 = vmatpush1.msra.mxu0 0.0
  %600 = vmatprep.subr.mxu0 0.0
  %601 = vmatpush1.msra.mxu0 0.0
  %602 = vmatprep.subr.mxu0 0.0
  %603 = vmatpush1.msra.mxu0 0.0
  %604 = vmatprep.subr.mxu0 0.0
  %605 = vmatpush1.msra.mxu0 0.0
  %606 = vmatprep.subr.mxu0 0.0
  %607 = vmatpush1.msra.mxu0 0.0
  %608 = vmatprep.subr.mxu0 0.0
  %609 = vmatpush1.msra.mxu0 0.0
  %610 = vmatprep.subr.mxu0 0.0
  %611 = vmatpush1.msra.mxu0 0.0
  %612 = vmatprep.subr.mxu0 0.0
  %613 = vmatpush1.msra.mxu0 0.0
  %614 = vmatprep.subr.mxu0 0.0
  %615 = vmatpush1.msra.mxu0 0.0
  %616 = vmatprep.mubr.f32.mxu0 0.0
  %617 = vmatmul.mubr.f32.gmra.mrb[0].mxu0 %v550
  %v618 = vpop.f32.mrb[0].mxu0
  %v619 = vadd.f32 0.0, %v618
  %v620 = vpop.f32.mrb[0].mxu0
  %621 = vdwg.mxu0
  %v622 = vsel %vm90, %v619, 0.0
  %v623 = vrot.slane %v622, 4
  %v624 = vadd.f32 %v622, %v623
  %v625 = vrot.slane %v624, 2
  %v626 = vadd.f32 %v624, %v625
  %v627 = vrot.slane %v626, 1
  %v628 = vadd.f32 %v626, %v627
  %v629 = vmul.f32 %v619, %v619
  %v630 = vsel %vm90, %v629, 0.0
  %v631 = vrot.slane %v630, 4
  %v632 = vadd.f32 %v630, %v631
  %v633 = vrot.slane %v632, 2
  %v634 = vadd.f32 %v632, %v633
  %v635 = vrot.slane %v634, 1
  %v636 = vadd.f32 %v634, %v635
  %v637 = vmul.f32 %v628, 0.125
  %v638 = vmul.f32 %v636, 0.125
  %v639 = vmul.f32 %v637, %v637
  %v640 = vsub.f32 %v638, %v639
  %v641 = vmax.f32 %v640, 0.0
  %v642 = vsub.f32 %v619, %v637
  %v643 = vadd.f32 %v641, 1e-05
  %v644 = vrsqrt.pop %v643
  %v645 = vmul.f32 %v642, %v644
  %v646 = vadd.f32 %v645, %v434
  %v647 = vmax.f32 %v646, 0.0
  %v648 = vld [vmem:[%s1 + $0x160] sm:$0xff]
  %v649 = vld [vmem:[%s1 + $0x168] sm:$0xff]
  %v650 = vld [vmem:[%s1 + $0x170] sm:$0xff]
  %v651 = vld [vmem:[%s1 + $0x178] sm:$0xff]
  %v652 = vld [vmem:[%s1 + $0x180] sm:$0xff]
  %v653 = vld [vmem:[%s1 + $0x188] sm:$0xff]
  %v654 = vld [vmem:[%s1 + $0x190] sm:$0xff]
  %v655 = vld [vmem:[%s1 + $0x198] sm:$0xff]
  %v657 = vsel %vm90, %v647, 0
  %659 = vmatprep.subr.mxu0 0.0
  %660 = vmatpush1.msra.mxu0 %v648
  %661 = vmatprep.subr.mxu0 0.0
  %662 = vmatpush1.msra.mxu0 %v649
  %663 = vmatprep.subr.mxu0 0.0
  %664 = vmatpush1.msra.mxu0 %v650
  %665 = vmatprep.subr.mxu0 0.0
  %666 = vmatpush1.msra.mxu0 %v651
  %667 = vmatprep.subr.mxu0 0.0
  %668 = vmatpush1.msra.mxu0 %v652
  %669 = vmatprep.subr.mxu0 0.0
  %670 = vmatpush1.msra.mxu0 %v653
  %671 = vmatprep.subr.mxu0 0.0
  %672 = vmatpush1.msra.mxu0 %v654
  %673 = vmatprep.subr.mxu0 0.0
  %674 = vmatpush1.msra.mxu0 %v655
  %675 = vmatprep.subr.mxu0 0.0
  %676 = vmatpush1.msra.mxu0 0.0
  %677 = vmatprep.subr.mxu0 0.0
  %678 = vmatpush1.msra.mxu0 0.0
  %679 = vmatprep.subr.mxu0 0.0
  %680 = vmatpush1.msra.mxu0 0.0
  %681 = vmatprep.subr.mxu0 0.0
  %682 = vmatpush1.msra.mxu0 0.0
  %683 = vmatprep.subr.mxu0 0.0
  %684 = vmatpush1.msra.mxu0 0.0
  %685 = vmatprep.subr.mxu0 0.0
  %686 = vmatpush1.msra.mxu0 0.0
  %687 = vmatprep.subr.mxu0 0.0
  %688 = vmatpush1.msra.mxu0 0.0
  %689 = vmatprep.subr.mxu0 0.0
  %690 = vmatpush1.msra.mxu0 0.0
  %691 = vmatprep.subr.mxu0 0.0
  %692 = vmatpush1.msra.mxu0 0.0
  %693 = vmatprep.subr.mxu0 0.0
  %694 = vmatpush1.msra.mxu0 0.0
  %695 = vmatprep.subr.mxu0 0.0
  %696 = vmatpush1.msra.mxu0 0.0
  %697 = vmatprep.subr.mxu0 0.0
  %698 = vmatpush1.msra.mxu0 0.0
  %699 = vmatprep.subr.mxu0 0.0
  %700 = vmatpush1.msra.mxu0 0.0
  %701 = vmatprep.subr.mxu0 0.0
  %702 = vmatpush1.msra.mxu0 0.0
  %703 = vmatprep.subr.mxu0 0.0
  %704 = vmatpush1.msra.mxu0 0.0
  %705 = vmatprep.subr.mxu0 0.0
  %706 = vmatpush1.msra.mxu0 0.0
  %707 = vmatprep.subr.mxu0 0.0
  %708 = vmatpush1.msra.mxu0 0.0
  %709 = vmatprep.subr.mxu0 0.0
  %710 = vmatpush1.msra.mxu0 0.0
  %711 = vmatprep.subr.mxu0 0.0
  %712 = vmatpush1.msra.mxu0 0.0
  %713 = vmatprep.subr.mxu0 0.0
  %714 = vmatpush1.msra.mxu0 0.0
  %715 = vmatprep.subr.mxu0 0.0
  %716 = vmatpush1.msra.mxu0 0.0
  %717 = vmatprep.subr.mxu0 0.0
  %718 = vmatpush1.msra.mxu0 0.0
  %719 = vmatprep.subr.mxu0 0.0
  %720 = vmatpush1.msra.mxu0 0.0
  %721 = vmatprep.subr.mxu0 0.0
  %722 = vmatpush1.msra.mxu0 0.0
  %723 = vmatprep.mubr.f32.mxu0 0.0
  %724 = vmatmul.mubr.f32.gmra.mrb[0].mxu0 %v657
  %v725 = vpop.f32.mrb[0].mxu0
  %v726 = vadd.f32 0.0, %v725
  %v727 = vpop.f32.mrb[0].mxu0
  %728 = vdwg.mxu0
  %v729 = vsel %vm90, %v726, 0.0
  %v730 = vrot.slane %v729, 4
  %v731 = vadd.f32 %v729, %v730
  %v732 = vrot.slane %v731, 2
  %v733 = vadd.f32 %v731, %v732
  %v734 = vrot.slane %v733, 1
  %v735 = vadd.f32 %v733, %v734
  %v736 = vmul.f32 %v726, %v726
  %v737 = vsel %vm90, %v736, 0.0
  %v738 = vrot.slane %v737, 4
  %v739 = vadd.f32 %v737, %v738
  %v740 = vrot.slane %v739, 2
  %v741 = vadd.f32 %v739, %v740
  %v742 = vrot.slane %v741, 1
  %v743 = vadd.f32 %v741, %v742
  %v744 = vmul.f32 %v735, 0.125
  %v745 = vmul.f32 %v743, 0.125
  %v746 = vmul.f32 %v744, %v744
  %v747 = vsub.f32 %v745, %v746
  %v748 = vmax.f32 %v747, 0.0
  %v749 = vsub.f32 %v726, %v744
  %v750 = vadd.f32 %v748, 1e-05
  %v751 = vrsqrt.pop %v750
  %v752 = vmul.f32 %v749, %v751
  %v753 = vmax.f32 %v752, 0.0
  %v754 = vld [vmem:[%s1 + $0x1a0] sm:$0xff]
  %v755 = vld [vmem:[%s1 + $0x1a8] sm:$0xff]
  %v756 = vld [vmem:[%s1 + $0x1b0] sm:$0xff]
  %v757 = vld [vmem:[%s1 + $0x1b8] sm:$0xff]
  %v758 = vld [vmem:[%s1 + $0x1c0] sm:$0xff]
  %v759 = vld [vmem:[%s1 + $0x1c8] sm:$0xff]
  %v760 = vld [vmem:[%s1 + $0x1d0] sm:$0xff]
  %v761 = vld [vmem:[%s1 + $0x1d8] sm:$0xff]
  %v763 = vsel %vm90, %v753, 0
  %765 = vmatprep.subr.mxu0 0.0
  %766 = vmatpush1.msra.mxu0 %v754
  %767 = vmatprep.subr.mxu0 0.0
  %768 = vmatpush1.msra.mxu0 %v755
  %769 = vmatprep.subr.mxu0 0.0
  %770 = vmatpush1.msra.mxu0 %v756
  %771 = vmatprep.subr.mxu0 0.0
  %772 = vmatpush1.msra.mxu0 %v757
  %773 = vmatprep.subr.mxu0 0.0
  %774 = vmatpush1.msra.mxu0 %v758
  %775 = vmatprep.subr.mxu0 0.0
  %776 = vmatpush1.msra.mxu0 %v759
  %777 = vmatprep.subr.mxu0 0.0
  %778 = vmatpush1.msra.mxu0 %v760
  %779 = vmatprep.subr.mxu0 0.0
  %780 = vmatpush1.msra.mxu0 %v761
  %781 = vmatprep.subr.mxu0 0.0
  %782 = vmatpush1.msra.mxu0 0.0
  %783 = vmatprep.subr.mxu0 0.0
  %784 = vmatpush1.msra.mxu0 0.0
  %785 = vmatprep.subr.mxu0 0.0
  %786 = vmatpush1.msra.mxu0 0.0
  %787 = vmatprep.subr.mxu0 0.0
  %788 = vmatpush1.msra.mxu0 0.0
  %789 = vmatprep.subr.mxu0 0.0
  %790 = vmatpush1.msra.mxu0 0.0
  %791 = vmatprep.subr.mxu0 0.0
  %792 = vmatpush1.msra.mxu0 0.0
  %793 = vmatprep.subr.mxu0 0.0
  %794 = vmatpush1.msra.mxu0 0.0
  %795 = vmatprep.subr.mxu0 0.0
  %796 = vmatpush1.msra.mxu0 0.0
  %797 = vmatprep.subr.mxu0 0.0
  %798 = vmatpush1.msra.mxu0 0.0
  %799 = vmatprep.subr.mxu0 0.0
  %800 = vmatpush1.msra.mxu0 0.0
  %801 = vmatprep.subr.mxu0 0.0
  %802 = vmatpush1.msra.mxu0 0.0
  %803 = vmatprep.subr.mxu0 0.0
  %804 = vmatpush1.msra.mxu0 0.0
  %805 = vmatprep.subr.mxu0 0.0
  %806 = vmatpush1.msra.mxu0 0.0
  %807 = vmatprep.subr.mxu0 0.0
  %808 = vmatpush1.msra.mxu0 0.0
  %809 = vmatprep.subr.mxu0 0.0
  %810 = vmatpush1.msra.mxu0 0.0
  %811 = vmatprep.subr.mxu0 0.0
  %812 = vmatpush1.msra.mxu0 0.0
  %813 = vmatprep.subr.mxu0 0.0
  %814 = vmatpush1.msra.mxu0 0.0
  %815 = vmatprep.subr.mxu0 0.0
  %816 = vmatpush1.msra.mxu0 0.0
  %817 = vmatprep.subr.mxu0 0.0
  %818 = vmatpush1.msra.mxu0 0.0
  %819 = vmatprep.subr.mxu0 0.0
  %820 = vmatpush1.msra.mxu0 0.0
  %821 = vmatprep.subr.mxu0 0.0
  %822 = vmatpush1.msra.mxu0 0.0
  %823 = vmatprep.subr.mxu0 0.0
  %824 = vmatpush1.msra.mxu0 0.0
  %825 = vmatprep.subr.mxu0 0.0
  %826 = vmatpush1.msra.mxu0 0.0
  %827 = vmatprep.subr.mxu0 0.0
  %828 = vmatpush1.msra.mxu0 0.0
  %829 = vmatprep.mubr.f32.mxu0 0.0
  %830 = vmatmul.mubr.f32.gmra.mrb[0].mxu0 %v763
  %v831 = vpop.f32.mrb[0].mxu0
  %v832 = vadd.f32 0.0, %v831
  %v833 = vpop.f32.mrb[0].mxu0
  %834 = vdwg.mxu0
  %v835 = vsel %vm90, %v832, 0.0
  %v836 = vrot.slane %v835, 4
  %v837 = vadd.f32 %v835, %v836
  %v838 = vrot.slane %v837, 2
  %v839 = vadd.f32 %v837, %v838
  %v840 = vrot.slane %v839, 1
  %v841 = vadd.f32 %v839, %v840
  %v842 = vmul.f32 %v832, %v832
  %v843 = vsel %vm90, %v842, 0.0
  %v844 = vrot.slane %v843, 4
  %v845 = vadd.f32 %v843, %v844
  %v846 = vrot.slane %v845, 2
  %v847 = vadd.f32 %v845, %v846
  %v848 = vrot.slane %v847, 1
  %v849 = vadd.f32 %v847, %v848
  %v850 = vmul.f32 %v841, 0.125
  %v851 = vmul.f32 %v849, 0.125
  %v852 = vmul.f32 %v850, %v850
  %v853 = vsub.f32 %v851, %v852
  %v854 = vmax.f32 %v853, 0.0
  %v855 = vsub.f32 %v832, %v850
  %v856 = vadd.f32 %v854, 1e-05
  %v857 = vrsqrt.pop %v856
  %v858 = vmul.f32 %v855, %v857
  %v859 = vadd.f32 %v858, %v647
  %v860 = vmax.f32 %v859, 0.0
  %v861 = vld [vmem:[%s1 + $0x1e0] sm:$0xff]
  %v862 = vld [vmem:[%s1 + $0x1e8] sm:$0xff]
  %v863 = vld [vmem:[%s1 + $0x1f0] sm:$0xff]
  %v864 = vld [vmem:[%s1 + $0x1f8] sm:$0xff]
  %v865 = vld [vmem:[%s1 + $0x200] sm:$0xff]
  %v866 = vld [vmem:[%s1 + $0x208] sm:$0xff]
  %v867 = vld [vmem:[%s1 + $0x210] sm:$0xff]
  %v868 = vld [vmem:[%s1 + $0x218] sm:$0xff]
  %v869 = vld [vmem:[%s1 + $0x220] sm:$0x1]
  %v870 = vlaneseq
  %v871 = vshrl.u32 %v870, 7
  %v872 = vsub.s32 0, %v871
  %v873 = vrot.slane %v869, %v872
  %v875 = vsel %vm90, %v860, 0
  %877 = vmatprep.subr.mxu0 0.0
  %878 = vmatpush1.msra.mxu0 %v861
  %879 = vmatprep.subr.mxu0 0.0
  %880 = vmatpush1.msra.mxu0 %v862
  %881 = vmatprep.subr.mxu0 0.0
  %882 = vmatpush1.msra.mxu0 %v863
  %883 = vmatprep.subr.mxu0 0.0
  %884 = vmatpush1.msra.mxu0 %v864
  %885 = vmatprep.subr.mxu0 0.0
  %886 = vmatpush1.msra.mxu0 %v865
  %887 = vmatprep.subr.mxu0 0.0
  %888 = vmatpush1.msra.mxu0 %v866
  %889 = vmatprep.subr.mxu0 0.0
  %890 = vmatpush1.msra.mxu0 %v867
  %891 = vmatprep.subr.mxu0 0.0
  %892 = vmatpush1.msra.mxu0 %v868
  %893 = vmatprep.subr.mxu0 0.0
  %894 = vmatpush1.msra.mxu0 0.0
  %895 = vmatprep.subr.mxu0 0.0
  %896 = vmatpush1.msra.mxu0 0.0
  %897 = vmatprep.subr.mxu0 0.0
  %898 = vmatpush1.msra.mxu0 0.0
  %899 = vmatprep.subr.mxu0 0.0
  %900 = vmatpush1.msra.mxu0 0.0
  %901 = vmatprep.subr.mxu0 0.0
  %902 = vmatpush1.msra.mxu0 0.0
  %903 = vmatprep.subr.mxu0 0.0
  %904 = vmatpush1.msra.mxu0 0.0
  %905 = vmatprep.subr.mxu0 0.0
  %906 = vmatpush1.msra.mxu0 0.0
  %907 = vmatprep.subr.mxu0 0.0
  %908 = vmatpush1.msra.mxu0 0.0
  %909 = vmatprep.subr.mxu0 0.0
  %910 = vmatpush1.msra.mxu0 0.0
  %911 = vmatprep.subr.mxu0 0.0
  %912 = vmatpush1.msra.mxu0 0.0
  %913 = vmatprep.subr.mxu0 0.0
  %914 = vmatpush1.msra.mxu0 0.0
  %915 = vmatprep.subr.mxu0 0.0
  %916 = vmatpush1.msra.mxu0 0.0
  %917 = vmatprep.subr.mxu0 0.0
  %918 = vmatpush1.msra.mxu0 0.0
  %919 = vmatprep.subr.mxu0 0.0
  %920 = vmatpush1.msra.mxu0 0.0
  %921 = vmatprep.subr.mxu0 0.0
  %922 = vmatpush1.msra.mxu0 0.0
  %923 = vmatprep.subr.mxu0 0.0
  %924 = vmatpush1.msra.mxu0 0.0
  %925 = vmatprep.subr.mxu0 0.0
  %926 = vmatpush1.msra.mxu0 0.0
  %927 = vmatprep.subr.mxu0 0.0
  %928 = vmatpush1.msra.mxu0 0.0
  %929 = vmatprep.subr.mxu0 0.0
  %930 = vmatpush1.msra.mxu0 0.0
  %931 = vmatprep.subr.mxu0 0.0
  %932 = vmatpush1.msra.mxu0 0.0
  %933 = vmatprep.subr.mxu0 0.0
  %934 = vmatpush1.msra.mxu0 0.0
  %935 = vmatprep.subr.mxu0 0.0
  %936 = vmatpush1.msra.mxu0 0.0
  %937 = vmatprep.subr.mxu0 0.0
  %938 = vmatpush1.msra.mxu0 0.0
  %939 = vmatprep.subr.mxu0 0.0
  %940 = vmatpush1.msra.mxu0 0.0
  %941 = vmatprep.mubr.f32.mxu0 0.0
  %942 = vmatmul.mubr.f32.gmra.mrb[0].mxu0 %v875
  %v943 = vpop.f32.mrb[0].mxu0
  %v944 = vadd.f32 %v873, %v943
  %v945 = vpop.f32.mrb[0].mxu0
  %946 = vdwg.mxu0
  %vm947 = vcmask 23552
  %948 = vst.msk [vmem:[%s2] sm:$0xff] %vm947, %v944
  // Predicated region
  $region10: #{resnet_forward.1} parent=0 // pred_check
    _
  $region11: #{resnet_forward.1} parent=0 // pred_check_branch
    %950 = sbr.rel (0) target = $region13
  $region12: #{resnet_forward.1} parent=0 // pred_region
    _
  $region13: #{resnet_forward.1} parent=0 // pred_fallthru
    _
  // Predicated region
  $region14: #{resnet_forward.1} parent=0 // pred_check
    _
  $region15: #{resnet_forward.1} parent=0 // pred_check_branch
    %952 = sbr.rel (0) target = $region17
  $region16: #{resnet_forward.1} parent=0 // pred_region
    _
  $region17: #{resnet_forward.1} parent=0 // pred_fallthru
    _

</llo_original>
